<compile_context>
chip_gen: v5e
topology: v5e:2x2
jax: 0.10.0
libtpu: 0.0.40
codegen_flags: <defaults>
</compile_context>

<pallas_src>
import functools
import math

import jax
import jax.numpy as jnp
from jax.experimental import pallas as pl
from jax.experimental.pallas import tpu as pltpu


def _mha_kernel(q_ref, k_ref, v_ref, mask_ref, out_ref, *, scale):
    # Block shapes: q/out (1, HB, TQ, D); k/v (1, HB, S, D); mask (1, 1, S).
    q = q_ref[0]                      # (HB, TQ, D)  native dtype (bf16 stays bf16)
    k = k_ref[0]                      # (HB, S,  D)
    v = v_ref[0]                      # (HB, S,  D)

    # Contract the shared D axis directly (no explicit k.T); f32 accumulation
    # on the MXU, scale applied on the f32 scores (matches PyTorch order).
    scores = jnp.einsum("hqd,hkd->hqk", q, k,
                        preferred_element_type=jnp.float32) * scale   # (HB, TQ, S)

    # masked_fill(mask, -1e9): key-padding mask, nonzero = masked out.
    masked = mask_ref[0] != 0                                         # (1, S)
    scores = jnp.where(masked, -1e9, scores)

    # Numerically stable softmax over keys, in f32 (VPU/EUP).
    scores = scores - jnp.max(scores, axis=-1, keepdims=True)
    exp_s = jnp.exp(scores)
    denom = jnp.sum(exp_s, axis=-1, keepdims=True)
    probs = exp_s * pl.reciprocal(denom, approx=True)

    # Attention dropout: identity (eval mode).

    # Cast probs to the value dtype so the second matmul also runs on the
    # native (bf16-capable) MXU path; accumulate in f32.
    out = jnp.einsum("hqk,hkd->hqd", probs.astype(v.dtype), v,
                     preferred_element_type=jnp.float32)              # (HB, TQ, D)
    out_ref[0] = out.astype(out_ref.dtype)


def _pick_q_tile(s):
    # Largest query tile <= 512 that divides S and keeps the (8,128) rule;
    # fall back to the full sequence (block == full dim is always legal).
    for t in (512, 256, 128, 64, 32, 16, 8):
        if s >= t and s % t == 0:
            return t
    return s


def multi_head_attention(q, k, v, mask, temperature, *, q_tile=None,
                         heads_per_block=None,
                         vmem_limit_bytes=48 * 1024 * 1024):
    """softmax((q @ k^T) / temperature, masked) @ v for (B, H, S, D) tensors.

    mask: bool/int array broadcastable to (B, 1, 1, S_k) (True/nonzero =
    masked out, PyTorch masked_fill convention), or None.
    Returns: (B, H, S_q, D) in q.dtype.  The attention map itself is never
    materialized in HBM (Block does not consume it).
    """
    B, H, S, D = q.shape
    Sk = k.shape[2]
    assert k.shape == (B, H, Sk, D) and v.shape == (B, H, Sk, D)

    tq = q_tile or _pick_q_tile(S)
    hb = heads_per_block or H          # batch all heads per step by default
    assert S % tq == 0 and H % hb == 0

    if mask is None:
        mask_i32 = jnp.zeros((B, 1, Sk), dtype=jnp.int32)
    else:
        mask_i32 = jnp.asarray(mask).reshape(B, 1, Sk).astype(jnp.int32)

    kernel = functools.partial(_mha_kernel, scale=1.0 / float(temperature))

    grid = (B, H // hb, S // tq)
    out = pl.pallas_call(
        kernel,
        out_shape=jax.ShapeDtypeStruct((B, H, S, D), q.dtype),
        grid_spec=pltpu.PrefetchScalarGridSpec(
            num_scalar_prefetch=0,
            grid=grid,
            in_specs=[
                pl.BlockSpec((1, hb, tq, D), lambda b, h, i: (b, h, i, 0)),
                pl.BlockSpec((1, hb, Sk, D), lambda b, h, i: (b, h, 0, 0)),
                pl.BlockSpec((1, hb, Sk, D), lambda b, h, i: (b, h, 0, 0)),
                pl.BlockSpec((1, 1, Sk), lambda b, h, i: (b, 0, 0)),
            ],
            out_specs=pl.BlockSpec((1, hb, tq, D), lambda b, h, i: (b, h, i, 0)),
        ),
        compiler_params=pltpu.CompilerParams(
            dimension_semantics=("parallel", "parallel", "parallel"),
            vmem_limit_bytes=vmem_limit_bytes),
    )(q, k, v, mask_i32)
    return out


def _reference(q, k, v, mask, temperature):
    scores = jnp.einsum("bhqd,bhkd->bhqk", q, k) / temperature
    if mask is not None:
        scores = jnp.where(mask, -1e9, scores)   # (B,1,1,Sk) broadcasts
    probs = jax.nn.softmax(scores, axis=-1)
    return jnp.einsum("bhqk,bhkd->bhqd", probs, v)


if __name__ == "__main__":
    # Small shapes consistent with the module: hidden_size=64, multi_head=4
    # -> head dim 16; seq len 8; batch 2.
    B, H, S, D = 2, 4, 8, 16
    temperature = math.sqrt(D)

    key = jax.random.PRNGKey(0)
    kq, kk, kv = jax.random.split(key, 3)
    q = jax.random.normal(kq, (B, H, S, D), dtype=jnp.float32)
    k = jax.random.normal(kk, (B, H, S, D), dtype=jnp.float32)
    v = jax.random.normal(kv, (B, H, S, D), dtype=jnp.float32)

    # Key-padding mask like Block's x_mask: True = masked position.
    mask = jnp.zeros((B, 1, 1, S), dtype=bool).at[1, 0, 0, S - 2:].set(True)

    out = multi_head_attention(q, k, v, mask, temperature)
    out = jax.block_until_ready(out)

    out_ref = _reference(q, k, v, mask, temperature)
    # approx reciprocal in the softmax -> compare at ~1e-3 tolerance.
    assert jnp.allclose(out, out_ref, atol=2e-3, rtol=2e-3), "output mismatch"

    print("KERNEL_OK")
</pallas_src>

<mosaic_0001>
module attributes {stable_mosaic.version = 11 : i64} {
  func.func @_mha_kernel(%arg0: i32, %arg1: i32, %arg2: i32, %arg3: memref<1x4x8x16xf32, #tpu.memory_space<vmem>>, %arg4: memref<1x4x8x16xf32, #tpu.memory_space<vmem>>, %arg5: memref<1x4x8x16xf32, #tpu.memory_space<vmem>>, %arg6: memref<1x1x8xi32, #tpu.memory_space<vmem>>, %arg7: memref<1x4x8x16xf32, #tpu.memory_space<vmem>>) attributes {dimension_semantics = [#tpu.dimension_semantics<parallel>, #tpu.dimension_semantics<parallel>, #tpu.dimension_semantics<parallel>], iteration_bounds = array<i64: 2, 1, 1>, scalar_prefetch = 0 : i64, scratch_operands = 0 : i64, tpu.core_type = #tpu.core_type<tc>, window_params = [{transform_indices = @transform_0, window_bounds = array<i64: 1, 4, 8, 16>}, {transform_indices = @transform_1, window_bounds = array<i64: 1, 4, 8, 16>}, {transform_indices = @transform_2, window_bounds = array<i64: 1, 4, 8, 16>}, {transform_indices = @transform_3, window_bounds = array<i64: 1, 1, 8>}, {transform_indices = @transform_4, window_bounds = array<i64: 1, 4, 8, 16>}]} {
    %c0 = arith.constant 0 : index
    %c0_0 = arith.constant 0 : index
    %c0_1 = arith.constant 0 : index
    %c0_2 = arith.constant 0 : index
    %0 = vector.load %arg3[%c0, %c0_0, %c0_1, %c0_2] : memref<1x4x8x16xf32, #tpu.memory_space<vmem>>, vector<1x4x8x16xf32>
    %1 = vector.shape_cast %0 : vector<1x4x8x16xf32> to vector<4x8x16xf32>
    %c0_3 = arith.constant 0 : index
    %c0_4 = arith.constant 0 : index
    %c0_5 = arith.constant 0 : index
    %c0_6 = arith.constant 0 : index
    %2 = vector.load %arg4[%c0_3, %c0_4, %c0_5, %c0_6] : memref<1x4x8x16xf32, #tpu.memory_space<vmem>>, vector<1x4x8x16xf32>
    %3 = vector.shape_cast %2 : vector<1x4x8x16xf32> to vector<4x8x16xf32>
    %c0_7 = arith.constant 0 : index
    %c0_8 = arith.constant 0 : index
    %c0_9 = arith.constant 0 : index
    %c0_10 = arith.constant 0 : index
    %4 = vector.load %arg5[%c0_7, %c0_8, %c0_9, %c0_10] : memref<1x4x8x16xf32, #tpu.memory_space<vmem>>, vector<1x4x8x16xf32>
    %5 = vector.shape_cast %4 : vector<1x4x8x16xf32> to vector<4x8x16xf32>
    "tpu.trace_start"() <{level = 10 : i32, message = "hqd,hkd->hqk"}> : () -> ()
    %cst = arith.constant dense<0.000000e+00> : vector<4x8x8xf32>
    %6 = tpu.matmul %1, %3, %cst {dimension_numbers = #tpu.dot_dimension_numbers<[2], [2], [1], [1], [0, 0, 0, 1, 1, 1], [0], [0]>} : vector<4x8x16xf32>, vector<4x8x16xf32>, vector<4x8x8xf32> -> vector<4x8x8xf32>
    "tpu.trace_stop"() : () -> ()
    %cst_11 = arith.constant 2.500000e-01 : f32
    %7 = vector.broadcast %cst_11 : f32 to vector<4x8x8xf32>
    %8 = arith.mulf %6, %7 : vector<4x8x8xf32>
    %c0_12 = arith.constant 0 : index
    %c0_13 = arith.constant 0 : index
    %c0_14 = arith.constant 0 : index
    %9 = vector.load %arg6[%c0_12, %c0_13, %c0_14] : memref<1x1x8xi32, #tpu.memory_space<vmem>>, vector<1x1x8xi32>
    %10 = vector.shape_cast %9 : vector<1x1x8xi32> to vector<1x8xi32>
    %c0_i32 = arith.constant 0 : i32
    %11 = vector.broadcast %c0_i32 : i32 to vector<1x8xi32>
    %12 = arith.cmpi ne, %10, %11 : vector<1x8xi32>
    %cst_15 = arith.constant -1.000000e+09 : f32
    %13 = vector.shape_cast %12 : vector<1x8xi1> to vector<1x1x8xi1>
    %14 = vector.broadcast %13 : vector<1x1x8xi1> to vector<4x8x8xi1>
    %15 = vector.broadcast %cst_15 : f32 to vector<4x8x8xf32>
    %16 = arith.select %14, %15, %8 : vector<4x8x8xi1>, vector<4x8x8xf32>
    %cst_16 = arith.constant dense<0xFF800000> : vector<4x8xf32>
    %17 = vector.multi_reduction <maximumf>, %16, %cst_16 [2] : vector<4x8x8xf32> to vector<4x8xf32>
    %18 = vector.shape_cast %17 : vector<4x8xf32> to vector<4x8x1xf32>
    %19 = vector.broadcast %18 : vector<4x8x1xf32> to vector<4x8x8xf32>
    %20 = arith.subf %16, %19 : vector<4x8x8xf32>
    %21 = math.exp %20 : vector<4x8x8xf32>
    %cst_17 = arith.constant dense<0.000000e+00> : vector<4x8xf32>
    %22 = vector.multi_reduction <add>, %21, %cst_17 [2] : vector<4x8x8xf32> to vector<4x8xf32>
    %23 = vector.shape_cast %22 : vector<4x8xf32> to vector<4x8x1xf32>
    %24 = tpu.reciprocal %23 {approx = true} : vector<4x8x1xf32> -> vector<4x8x1xf32>
    %25 = vector.broadcast %24 : vector<4x8x1xf32> to vector<4x8x8xf32>
    %26 = arith.mulf %21, %25 : vector<4x8x8xf32>
    "tpu.trace_start"() <{level = 10 : i32, message = "hqk,hkd->hqd"}> : () -> ()
    %cst_18 = arith.constant dense<0.000000e+00> : vector<4x8x16xf32>
    %27 = tpu.matmul %26, %5, %cst_18 {dimension_numbers = #tpu.dot_dimension_numbers<[2], [1], [1], [2], [0, 0, 0, 1, 1, 2], [0], [0]>} : vector<4x8x8xf32>, vector<4x8x16xf32>, vector<4x8x16xf32> -> vector<4x8x16xf32>
    "tpu.trace_stop"() : () -> ()
    %c0_19 = arith.constant 0 : index
    %c0_20 = arith.constant 0 : index
    %c0_21 = arith.constant 0 : index
    %c0_22 = arith.constant 0 : index
    %28 = vector.load %arg7[%c0_19, %c0_20, %c0_21, %c0_22] : memref<1x4x8x16xf32, #tpu.memory_space<vmem>>, vector<1x4x8x16xf32>
    %29 = vector.shape_cast %28 : vector<1x4x8x16xf32> to vector<4x8x16xf32>
    %30 = vector.shape_cast %27 : vector<4x8x16xf32> to vector<1x4x8x16xf32>
    tpu.vector_store %arg7[%c0_19, %c0_20, %c0_21, %c0_22], %30 {strides = array<i32>} : memref<1x4x8x16xf32, #tpu.memory_space<vmem>>, vector<1x4x8x16xf32>,
    return
  }
  func.func @transform_0(%arg0: i32, %arg1: i32, %arg2: i32) -> (i32, i32, i32, i32) {
    %c0_i32 = arith.constant 0 : i32
    %c0_i32_0 = arith.constant 0 : i32
    return %arg0, %arg1, %arg2, %c0_i32 : i32, i32, i32, i32
  }
  func.func @transform_1(%arg0: i32, %arg1: i32, %arg2: i32) -> (i32, i32, i32, i32) {
    %c0_i32 = arith.constant 0 : i32
    %c0_i32_0 = arith.constant 0 : i32
    %c0_i32_1 = arith.constant 0 : i32
    return %arg0, %arg1, %c0_i32, %c0_i32_0 : i32, i32, i32, i32
  }
  func.func @transform_2(%arg0: i32, %arg1: i32, %arg2: i32) -> (i32, i32, i32, i32) {
    %c0_i32 = arith.constant 0 : i32
    %c0_i32_0 = arith.constant 0 : i32
    %c0_i32_1 = arith.constant 0 : i32
    return %arg0, %arg1, %c0_i32, %c0_i32_0 : i32, i32, i32, i32
  }
  func.func @transform_3(%arg0: i32, %arg1: i32, %arg2: i32) -> (i32, i32, i32) {
    %c0_i32 = arith.constant 0 : i32
    %c0_i32_0 = arith.constant 0 : i32
    %c0_i32_1 = arith.constant 0 : i32
    return %arg0, %c0_i32, %c0_i32_0 : i32, i32, i32
  }
  func.func @transform_4(%arg0: i32, %arg1: i32, %arg2: i32) -> (i32, i32, i32, i32) {
    %c0_i32 = arith.constant 0 : i32
    %c0_i32_0 = arith.constant 0 : i32
    return %arg0, %arg1, %arg2, %c0_i32 : i32, i32, i32, i32
  }
}

</mosaic_0001>

<llo_original>
// kernel: tpu_custom_call.1
$region0: #{tpu_custom_call.1}
  #allocation0 [shape = 'u32[]', space=smem, size = 0x4, offset = 0x4, fixed_abs, tag = 'smem constant byte address 0x4 - core index']
  #allocation1 [shape = 'u32[72,128]{1,0:T(1,128)}', space=vmem, size = 0x9000, scoped, tag = 'internal scratch']
  %s0 = inlined_call_operand.hbm [shape: f32[2,4,8,16], index: 0, kind: input, shape index: {}]
  %s1 = inlined_call_operand.hbm [shape: f32[2,4,8,16], index: 1, kind: input, shape index: {}]
  %s2 = inlined_call_operand.hbm [shape: f32[2,4,8,16], index: 2, kind: input, shape index: {}]
  %s3 = inlined_call_operand.vmem [shape: s32[2,1,8], index: 3, kind: input, shape index: {}]
  %s4 = inlined_call_operand.hbm [shape: f32[2,4,8,16], index: 4, kind: output, shape index: {}]
  %s5 = sld [smem:[#allocation0]]
  $region61: #{tpu_custom_call.1} parent=0
    _
  %s7 = ssub.s32 1, %s5
  %s8 = scalar_select 0, %s7, %s5
  $region1: #{tpu_custom_call.1} parent=0
    #allocation2 [shape = 'u8[32768]{0}', space=vmem, size = 0x8000, scoped, tag = 'input window, operand 0']
    #allocation3 [shape = 's32[2]{0}', space=sflag, size = 0x8, scoped, tag = 'scoped memory for tpu_custom_call.1']
    #allocation4 [shape = 's32[2]{0}', space=sflag, size = 0x8, scoped, tag = 'scoped memory for tpu_custom_call.1']
    #allocation5 [shape = 'u8[32768]{0}', space=vmem, size = 0x8000, scoped, tag = 'input window, operand 1']
    #allocation6 [shape = 's32[2]{0}', space=sflag, size = 0x8, scoped, tag = 'scoped memory for tpu_custom_call.1']
    #allocation7 [shape = 'u8[32768]{0}', space=vmem, size = 0x8000, scoped, tag = 'input window, operand 2']
    #allocation8 [shape = 'u8[32768]{0}', space=vmem, size = 0x8000, scoped, tag = 'output window, operand 0']
    %9 = vsyncpa [#allocation3], 0
    %s10 = scalar_lea.sflag [#allocation3], 1
    %11 = vsyncpa %s10, 0
    %12 = vsyncpa [#allocation6], 0
    %s13 = scalar_lea.sflag [#allocation6], 1
    %14 = vsyncpa %s13, 0
    %15 = vsyncpa [#allocation4], 0
    %s16 = scalar_lea.sflag [#allocation4], 1
    %17 = vsyncpa %s16, 0
    loop: start=0, step=1, limit=4
    $region2: #{tpu_custom_call.1} parent=1 // loop_pre_header
      _
    $region3: #{tpu_custom_call.1} parent=1 // loop_header
      %s19 = sphi 0, %s23
      %p20 = scmp.ge.s32.totalorder %s19, 4
      %s26 = sphi 0, %s45
      %s27 = sphi 0, %s41
      %s28 = sphi 0, %s37
      %s29 = sphi 0, %s26
      %s30 = sphi 0, %s27
      %s31 = sphi 0, %s28
      %s32 = sphi 0, %s29
      %s33 = sphi 0, %s30
      %s34 = sphi 0, %s31
      %s52 = sphi 0, %s54
      %s55 = sphi 0, %s52
      %s56 = sphi 0, %s55
      %s72 = sphi 0, %s56
      %s80 = sphi 0, %s82
      %s83 = sphi 0, %s80
      %s84 = sphi 0, %s83
      %s100 = sphi 0, %s84
      %s108 = sphi 0, %s110
      %s111 = sphi 0, %s108
      %s112 = sphi 0, %s111
      %s128 = sphi 0, %s112
      %s134 = sphi 0, %s136
      %s137 = sphi 0, %s134
      %s138 = sphi 0, %s137
      %s154 = sphi 0, %s138
      %s164 = sphi 0, %s166
      %s167 = sphi 0, %s164
      %s168 = sphi 0, %s167
      %s184 = sphi 0, %s168
    $region4: #{tpu_custom_call.1} parent=1 // loop_header_branch
      %22 = sbr.rel (%p20) target = $region8
    $region5: #{tpu_custom_call.1} parent=1 // loop_body
      %s24 = ssub.s32 %s19, 1
      %s25 = ssub.s32 %s19, 2
      %s35 = sadd.s32 1, %s28
      %p36 = scmp.ge.s32.totalorder %s35, 1
      %s37 = scalar_select %p36, 0, %s35
      %s38 = sadd.s32 1, %s27
      %s39 = scalar_select %p36, %s38, %s27
      %p40 = scmp.ge.s32.totalorder %s39, 1
      %s41 = scalar_select %p40, 0, %s39
      %s42 = sadd.s32 1, %s26
      %s43 = scalar_select %p40, %s42, %s26
      %p44 = scmp.ge.s32.totalorder %s43, 2
      %s45 = scalar_select %p44, 0, %s43
      %s46 = ssub.s32 %s26, %s45
      %s47 = ssub.s32 %s27, %s41
      %s48 = sor.u32 %s46, %s47
      %s49 = ssub.s32 %s28, %s37
      %s50 = sor.u32 %s48, %s49
      %p51 = scmp.eq.s32.totalorder %s50, 0
      %s53 = sadd.s32 %s52, 1
      %s54 = scalar_select %p51, %s52, %s53
      %p57 = pneg %p51
      %p58 = scmp.eq.s32.totalorder %s19, 1
      %p59 = por %p57, %p58
      %p60 = scmp.ne.s32.totalorder %s52, %s55
      %p61 = scmp.eq.s32.totalorder %s19, 0
      %p62 = por %p60, %p61
      %p63 = scmp.ne.s32.totalorder %s52, %s55
      %p64 = scmp.eq.s32.totalorder %s24, 1
      %p65 = por %p63, %p64
      %p66 = scmp.ne.s32.totalorder %s55, %s56
      %p67 = scmp.eq.s32.totalorder %s24, 0
      %p68 = por %p66, %p67
      %p69 = scmp.ne.s32.totalorder %s55, %s56
      %p70 = scmp.eq.s32.totalorder %s25, 1
      %p71 = por %p69, %p70
      %p73 = scmp.ne.s32.totalorder %s56, %s72
      %p74 = scmp.eq.s32.totalorder %s25, 0
      %p75 = por %p73, %p74
      %s76 = ssub.s32 %s26, %s45
      %s77 = ssub.s32 %s27, %s41
      %s78 = sor.u32 %s76, %s77
      %p79 = scmp.eq.s32.totalorder %s78, 0
      %s81 = sadd.s32 %s80, 1
      %s82 = scalar_select %p79, %s80, %s81
      %p85 = pneg %p79
      %p86 = scmp.eq.s32.totalorder %s19, 1
      %p87 = por %p85, %p86
      %p88 = scmp.ne.s32.totalorder %s80, %s83
      %p89 = scmp.eq.s32.totalorder %s19, 0
      %p90 = por %p88, %p89
      %p91 = scmp.ne.s32.totalorder %s80, %s83
      %p92 = scmp.eq.s32.totalorder %s24, 1
      %p93 = por %p91, %p92
      %p94 = scmp.ne.s32.totalorder %s83, %s84
      %p95 = scmp.eq.s32.totalorder %s24, 0
      %p96 = por %p94, %p95
      %p97 = scmp.ne.s32.totalorder %s83, %s84
      %p98 = scmp.eq.s32.totalorder %s25, 1
      %p99 = por %p97, %p98
      %p101 = scmp.ne.s32.totalorder %s84, %s100
      %p102 = scmp.eq.s32.totalorder %s25, 0
      %p103 = por %p101, %p102
      %s104 = ssub.s32 %s26, %s45
      %s105 = ssub.s32 %s27, %s41
      %s106 = sor.u32 %s104, %s105
      %p107 = scmp.eq.s32.totalorder %s106, 0
      %s109 = sadd.s32 %s108, 1
      %s110 = scalar_select %p107, %s108, %s109
      %p113 = pneg %p107
      %p114 = scmp.eq.s32.totalorder %s19, 1
      %p115 = por %p113, %p114
      %p116 = scmp.ne.s32.totalorder %s108, %s111
      %p117 = scmp.eq.s32.totalorder %s19, 0
      %p118 = por %p116, %p117
      %p119 = scmp.ne.s32.totalorder %s108, %s111
      %p120 = scmp.eq.s32.totalorder %s24, 1
      %p121 = por %p119, %p120
      %p122 = scmp.ne.s32.totalorder %s111, %s112
      %p123 = scmp.eq.s32.totalorder %s24, 0
      %p124 = por %p122, %p123
      %p125 = scmp.ne.s32.totalorder %s111, %s112
      %p126 = scmp.eq.s32.totalorder %s25, 1
      %p127 = por %p125, %p126
      %p129 = scmp.ne.s32.totalorder %s112, %s128
      %p130 = scmp.eq.s32.totalorder %s25, 0
      %p131 = por %p129, %p130
      %s132 = ssub.s32 %s26, %s45
      %p133 = scmp.eq.s32.totalorder %s132, 0
      %s135 = sadd.s32 %s134, 1
      %s136 = scalar_select %p133, %s134, %s135
      %p139 = pneg %p133
      %p140 = scmp.eq.s32.totalorder %s19, 1
      %p141 = por %p139, %p140
      %p142 = scmp.ne.s32.totalorder %s134, %s137
      %p143 = scmp.eq.s32.totalorder %s19, 0
      %p144 = por %p142, %p143
      %p145 = scmp.ne.s32.totalorder %s134, %s137
      %p146 = scmp.eq.s32.totalorder %s24, 1
      %p147 = por %p145, %p146
      %p148 = scmp.ne.s32.totalorder %s137, %s138
      %p149 = scmp.eq.s32.totalorder %s24, 0
      %p150 = por %p148, %p149
      %p151 = scmp.ne.s32.totalorder %s137, %s138
      %p152 = scmp.eq.s32.totalorder %s25, 1
      %p153 = por %p151, %p152
      %p155 = scmp.ne.s32.totalorder %s138, %s154
      %p156 = scmp.eq.s32.totalorder %s25, 0
      %p157 = por %p155, %p156
      %s158 = ssub.s32 %s26, %s45
      %s159 = ssub.s32 %s27, %s41
      %s160 = sor.u32 %s158, %s159
      %s161 = ssub.s32 %s28, %s37
      %s162 = sor.u32 %s160, %s161
      %p163 = scmp.eq.s32.totalorder %s162, 0
      %s165 = sadd.s32 %s164, 1
      %s166 = scalar_select %p163, %s164, %s165
      %p169 = pneg %p163
      %p170 = scmp.eq.s32.totalorder %s19, 1
      %p171 = por %p169, %p170
      %p172 = scmp.ne.s32.totalorder %s164, %s167
      %p173 = scmp.eq.s32.totalorder %s19, 0
      %p174 = por %p172, %p173
      %p175 = scmp.ne.s32.totalorder %s164, %s167
      %p176 = scmp.eq.s32.totalorder %s24, 1
      %p177 = por %p175, %p176
      %p178 = scmp.ne.s32.totalorder %s167, %s168
      %p179 = scmp.eq.s32.totalorder %s24, 0
      %p180 = por %p178, %p179
      %p181 = scmp.ne.s32.totalorder %s167, %s168
      %p182 = scmp.eq.s32.totalorder %s25, 1
      %p183 = por %p181, %p182
      %p185 = scmp.ne.s32.totalorder %s168, %s184
      %p186 = scmp.eq.s32.totalorder %s25, 0
      %p187 = por %p185, %p186
      %p188 = scmp.le.s32.totalorder 1, %s19
      %p189 = scmp.lt.s32.totalorder %s19, 3
      %p190 = pnand %p188, %p189
      %p191 = pneg %p190
      // Predicated region
      $region9: #{tpu_custom_call.1} parent=5 // pred_check
        _
      $region10: #{tpu_custom_call.1} parent=5 // pred_check_branch
        %193 = sbr.rel (%p190) target = $region12
      $region11: #{tpu_custom_call.1} parent=5 // pred_region
        %s194 = ssub.s32 %s19, 1
      $region12: #{tpu_custom_call.1} parent=5 // pred_fallthru
        _
      %p195 = scmp.lt.s32.totalorder %s19, 2
      // Predicated region
      $region13: #{tpu_custom_call.1} parent=5 // pred_check
        %p196 = pneg %p195
      $region14: #{tpu_custom_call.1} parent=5 // pred_check_branch
        %198 = sbr.rel (%p196) target = $region16
      $region15: #{tpu_custom_call.1} parent=5 // pred_region
        // Predicated region
        $region17: #{tpu_custom_call.1} parent=15 // pred_check
          %p199 = pneg %p62
        $region18: #{tpu_custom_call.1} parent=15 // pred_check_branch
          %201 = sbr.rel (%p199) target = $region20
        $region19: #{tpu_custom_call.1} parent=15 // pred_region
          %s202 = sand.u32 %s52, 1
          %s203 = scalar_lea.sflag [#allocation3], %s202
          %s204 = sand.u32 %s52, 1
          %s205 = smul.addr %s204, 32
          %s206 = scalar_lea.vmem [#allocation2], %s205
          %s207 = smul.u32 4, %s27
          %209 = vsyncadd %s203, 0
          %s210 = sadd.s32 %s28, %s207
          %s211 = smul.addr %s26, 4
          %s212 = sadd.s32 %s210, %s211
          %s213 = smul.addr %s212, 8
          %s214 = scalar_lea.hbm %s0, %s213
          %s215 = sshll.u32 %s214, 4
          %s216 = int_to_ptr.hbm [resolvable:$true] %s215
          %s217 = sshll.u32 %s206, 4
          %s218 = int_to_ptr.vmem [resolvable:$true] %s217
          %223 = dma.hbm_to_vmem [thread:$0]  %s216, 512, %s218, %s203, 128, 128, 8
        $region20: #{tpu_custom_call.1} parent=15 // pred_fallthru
          _
        // Predicated region
        $region21: #{tpu_custom_call.1} parent=15 // pred_check
          %p224 = pneg %p90
        $region22: #{tpu_custom_call.1} parent=15 // pred_check_branch
          %226 = sbr.rel (%p224) target = $region24
        $region23: #{tpu_custom_call.1} parent=15 // pred_region
          %s227 = sand.u32 %s19, 1
          %s228 = scalar_lea.sflag [#allocation6], %s227
          %s229 = sand.u32 %s80, 1
          %s230 = smul.addr %s229, 32
          %s231 = scalar_lea.vmem [#allocation5], %s230
          %s232 = smul.u32 4, %s27
          %234 = vsyncadd %s228, 0
          %s235 = smul.addr %s26, 4
          %s236 = sadd.s32 %s232, %s235
          %s237 = smul.addr %s236, 8
          %s238 = scalar_lea.hbm %s1, %s237
          %s239 = sshll.u32 %s238, 4
          %s240 = int_to_ptr.hbm [resolvable:$true] %s239
          %s241 = sshll.u32 %s231, 4
          %s242 = int_to_ptr.vmem [resolvable:$true] %s241
          %247 = dma.hbm_to_vmem [thread:$0]  %s240, 512, %s242, %s228, 128, 128, 8
        $region24: #{tpu_custom_call.1} parent=15 // pred_fallthru
          _
        // Predicated region
        $region25: #{tpu_custom_call.1} parent=15 // pred_check
          %p248 = pneg %p118
        $region26: #{tpu_custom_call.1} parent=15 // pred_check_branch
          %250 = sbr.rel (%p248) target = $region28
        $region27: #{tpu_custom_call.1} parent=15 // pred_region
          %s251 = sand.u32 %s19, 1
          %s252 = scalar_lea.sflag [#allocation6], %s251
          %s253 = sand.u32 %s108, 1
          %s254 = smul.addr %s253, 32
          %s255 = scalar_lea.vmem [#allocation7], %s254
          %s256 = smul.u32 4, %s27
          %258 = vsyncadd %s252, 0
          %s259 = smul.addr %s26, 4
          %s260 = sadd.s32 %s256, %s259
          %s261 = smul.addr %s260, 8
          %s262 = scalar_lea.hbm %s2, %s261
          %s263 = sshll.u32 %s262, 4
          %s264 = int_to_ptr.hbm [resolvable:$true] %s263
          %s265 = sshll.u32 %s255, 4
          %s266 = int_to_ptr.vmem [resolvable:$true] %s265
          %271 = dma.hbm_to_vmem [thread:$0]  %s264, 512, %s266, %s252, 128, 128, 8
        $region28: #{tpu_custom_call.1} parent=15 // pred_fallthru
          _
        // Predicated region
        $region29: #{tpu_custom_call.1} parent=15 // pred_check
          %p272 = pneg %p144
        $region30: #{tpu_custom_call.1} parent=15 // pred_check_branch
          %274 = sbr.rel (%p272) target = $region32
        $region31: #{tpu_custom_call.1} parent=15 // pred_region
          %p275 = scmp.lt.s32.totalorder %s26, 1
          %s276 = scalar_select %p275, %s26, 1
          %s277 = scalar_lea.vmem %s3, %s276
        $region32: #{tpu_custom_call.1} parent=15 // pred_fallthru
          _
      $region16: #{tpu_custom_call.1} parent=5 // pred_fallthru
        _
      %p278 = scmp.le.s32.totalorder 1, %s19
      %p279 = scmp.lt.s32.totalorder %s19, 3
      %p280 = pnand %p278, %p279
      %p281 = pneg %p280
      // Predicated region
      $region33: #{tpu_custom_call.1} parent=5 // pred_check
        _
      $region34: #{tpu_custom_call.1} parent=5 // pred_check_branch
        %283 = sbr.rel (%p280) target = $region36
      $region35: #{tpu_custom_call.1} parent=5 // pred_region
        %s284 = ssub.s32 %s19, 1
        %s285 = sand.u32 %s55, 1
        %s286 = scalar_lea.sflag [#allocation3], %s285
        %s287 = sand.u32 %s55, 1
        %s288 = smul.addr %s287, 32
        %s289 = scalar_lea.vmem [#allocation2], %s288
        // Predicated region
        $region37: #{tpu_custom_call.1} parent=35 // pred_check
          %p290 = pneg %p68
        $region38: #{tpu_custom_call.1} parent=35 // pred_check_branch
          %292 = sbr.rel (%p290) target = $region40
        $region39: #{tpu_custom_call.1} parent=35 // pred_region
          %294 = dma.done %s286, 512
        $region40: #{tpu_custom_call.1} parent=35 // pred_fallthru
          _
        %s295 = sand.u32 %s24, 1
        %s296 = scalar_lea.sflag [#allocation6], %s295
        %s297 = sand.u32 %s83, 1
        %s298 = smul.addr %s297, 32
        %s299 = scalar_lea.vmem [#allocation5], %s298
        // Predicated region
        $region41: #{tpu_custom_call.1} parent=35 // pred_check
          %p300 = pneg %p96
        $region42: #{tpu_custom_call.1} parent=35 // pred_check_branch
          %302 = sbr.rel (%p300) target = $region44
        $region43: #{tpu_custom_call.1} parent=35 // pred_region
          %304 = dma.done %s296, 512
        $region44: #{tpu_custom_call.1} parent=35 // pred_fallthru
          _
        %s305 = sand.u32 %s24, 1
        %s306 = scalar_lea.sflag [#allocation6], %s305
        %s307 = sand.u32 %s111, 1
        %s308 = smul.addr %s307, 32
        %s309 = scalar_lea.vmem [#allocation7], %s308
        // Predicated region
        $region45: #{tpu_custom_call.1} parent=35 // pred_check
          %p310 = pneg %p124
        $region46: #{tpu_custom_call.1} parent=35 // pred_check_branch
          %312 = sbr.rel (%p310) target = $region48
        $region47: #{tpu_custom_call.1} parent=35 // pred_region
          %314 = dma.done %s306, 512
        $region48: #{tpu_custom_call.1} parent=35 // pred_fallthru
          _
        %s315 = sand.u32 %s55, 1
        %s316 = scalar_lea.sflag [#allocation3], %s315
        %s317 = sand.u32 %s55, 1
        %s318 = smul.addr %s317, 32
        %s319 = scalar_lea.vmem [#allocation2], %s318
        %p320 = pneg %p68
        %p321 = pneg %p65
        %s322 = sand.u32 %s24, 1
        %s323 = scalar_lea.sflag [#allocation6], %s322
        %s324 = sand.u32 %s83, 1
        %s325 = smul.addr %s324, 32
        %s326 = scalar_lea.vmem [#allocation5], %s325
        %p327 = pneg %p96
        %p328 = pneg %p93
        %s329 = sand.u32 %s24, 1
        %s330 = scalar_lea.sflag [#allocation6], %s329
        %s331 = sand.u32 %s111, 1
        %s332 = smul.addr %s331, 32
        %s333 = scalar_lea.vmem [#allocation7], %s332
        %p334 = pneg %p124
        %p335 = pneg %p121
        %p336 = scmp.lt.s32.totalorder %s29, 1
        %s337 = scalar_select %p336, %s29, 1
        %s338 = scalar_lea.vmem %s3, %s337
        %p339 = pneg %p150
        %p340 = pneg %p147
        %p341 = pneg %p180
        %p342 = pneg %p177
        %s343 = sand.u32 %s167, 1
        %s344 = scalar_lea.sflag [#allocation4], %s343
        %s345 = sand.u32 %s167, 1
        %s346 = smul.addr %s345, 32
        %s347 = scalar_lea.vmem [#allocation8], %s346
        %s348 = smul.u32 4, %s30
        %s349 = smul.u32 4, %s30
        %s350 = smul.u32 4, %s30
        %p351 = scmp.lt.s32.totalorder %s29, 1
        %s352 = scalar_select %p351, %s29, 1
        %s353 = scalar_lea.vmem %s3, %s352
        %s354 = smul.u32 4, %s30
        %v355 = vld [vmem:[%s289] sm:$0xff]
        %v356 = vld [vmem:[%s289 + $0x8] sm:$0xff]
        %v357 = vld [vmem:[%s289 + $0x10] sm:$0xff]
        %v358 = vld [vmem:[%s289 + $0x18] sm:$0xff]
        %v359 = vld [vmem:[%s299] sm:$0xff]
        %v360 = vld [vmem:[%s299 + $0x8] sm:$0xff]
        %v361 = vld [vmem:[%s299 + $0x10] sm:$0xff]
        %v362 = vld [vmem:[%s299 + $0x18] sm:$0xff]
        %v363 = vld [vmem:[%s309] sm:$0xff]
        %v364 = vld [vmem:[%s309 + $0x8] sm:$0xff]
        %v365 = vld [vmem:[%s309 + $0x10] sm:$0xff]
        %v366 = vld [vmem:[%s309 + $0x18] sm:$0xff]
        %vm367 = vcmask 130048
        %v369 = vsel %vm367, %v355, 0
        %v372 = vsel %vm367, %v359, 0
        %374 = vmatpush.xpose.msra.mxu0 0.0
        %375 = vmatpush.xpose.msra.mxu0 0.0
        %376 = vmatpush.xpose.msra.mxu0 0.0
        %377 = vmatpush.xpose.msra.mxu0 0.0
        %378 = vmatpush.xpose.msra.mxu0 0.0
        %379 = vmatpush.xpose.msra.mxu0 0.0
        %380 = vmatpush.xpose.msra.mxu0 0.0
        %381 = vmatpush.xpose.msra.mxu0 0.0
        %382 = vmatpush.xpose.msra.mxu0 0.0
        %383 = vmatpush.xpose.msra.mxu0 0.0
        %384 = vmatpush.xpose.msra.mxu0 0.0
        %385 = vmatpush.xpose.msra.mxu0 0.0
        %386 = vmatpush.xpose.msra.mxu0 0.0
        %387 = vmatpush.xpose.msra.mxu0 0.0
        %388 = vmatpush.xpose.msra.mxu0 0.0
        %389 = vmatpush.xpose.msra.mxu0 %v372
        %390 = vmatmul.f32.gmra.mxu0 %v369
        %v391 = vpop.f32.mrf.mxu0
        %v392 = vadd.f32 0.0, %v391
        %393 = vdwg.mxu0
        %v395 = vsel %vm367, %v356, 0
        %v398 = vsel %vm367, %v360, 0
        %400 = vmatpush.xpose.msra.mxu0 0.0
        %401 = vmatpush.xpose.msra.mxu0 0.0
        %402 = vmatpush.xpose.msra.mxu0 0.0
        %403 = vmatpush.xpose.msra.mxu0 0.0
        %404 = vmatpush.xpose.msra.mxu0 0.0
        %405 = vmatpush.xpose.msra.mxu0 0.0
        %406 = vmatpush.xpose.msra.mxu0 0.0
        %407 = vmatpush.xpose.msra.mxu0 0.0
        %408 = vmatpush.xpose.msra.mxu0 0.0
        %409 = vmatpush.xpose.msra.mxu0 0.0
        %410 = vmatpush.xpose.msra.mxu0 0.0
        %411 = vmatpush.xpose.msra.mxu0 0.0
        %412 = vmatpush.xpose.msra.mxu0 0.0
        %413 = vmatpush.xpose.msra.mxu0 0.0
        %414 = vmatpush.xpose.msra.mxu0 0.0
        %415 = vmatpush.xpose.msra.mxu0 %v398
        %416 = vmatmul.f32.gmra.mxu0 %v395
        %v417 = vpop.f32.mrf.mxu0
        %v418 = vadd.f32 0.0, %v417
        %419 = vdwg.mxu0
        %v421 = vsel %vm367, %v357, 0
        %v424 = vsel %vm367, %v361, 0
        %426 = vmatpush.xpose.msra.mxu0 0.0
        %427 = vmatpush.xpose.msra.mxu0 0.0
        %428 = vmatpush.xpose.msra.mxu0 0.0
        %429 = vmatpush.xpose.msra.mxu0 0.0
        %430 = vmatpush.xpose.msra.mxu0 0.0
        %431 = vmatpush.xpose.msra.mxu0 0.0
        %432 = vmatpush.xpose.msra.mxu0 0.0
        %433 = vmatpush.xpose.msra.mxu0 0.0
        %434 = vmatpush.xpose.msra.mxu0 0.0
        %435 = vmatpush.xpose.msra.mxu0 0.0
        %436 = vmatpush.xpose.msra.mxu0 0.0
        %437 = vmatpush.xpose.msra.mxu0 0.0
        %438 = vmatpush.xpose.msra.mxu0 0.0
        %439 = vmatpush.xpose.msra.mxu0 0.0
        %440 = vmatpush.xpose.msra.mxu0 0.0
        %441 = vmatpush.xpose.msra.mxu0 %v424
        %442 = vmatmul.f32.gmra.mxu0 %v421
        %v443 = vpop.f32.mrf.mxu0
        %v444 = vadd.f32 0.0, %v443
        %445 = vdwg.mxu0
        %v447 = vsel %vm367, %v358, 0
        %v450 = vsel %vm367, %v362, 0
        %452 = vmatpush.xpose.msra.mxu0 0.0
        %453 = vmatpush.xpose.msra.mxu0 0.0
        %454 = vmatpush.xpose.msra.mxu0 0.0
        %455 = vmatpush.xpose.msra.mxu0 0.0
        %456 = vmatpush.xpose.msra.mxu0 0.0
        %457 = vmatpush.xpose.msra.mxu0 0.0
        %458 = vmatpush.xpose.msra.mxu0 0.0
        %459 = vmatpush.xpose.msra.mxu0 0.0
        %460 = vmatpush.xpose.msra.mxu0 0.0
        %461 = vmatpush.xpose.msra.mxu0 0.0
        %462 = vmatpush.xpose.msra.mxu0 0.0
        %463 = vmatpush.xpose.msra.mxu0 0.0
        %464 = vmatpush.xpose.msra.mxu0 0.0
        %465 = vmatpush.xpose.msra.mxu0 0.0
        %466 = vmatpush.xpose.msra.mxu0 0.0
        %467 = vmatpush.xpose.msra.mxu0 %v450
        %468 = vmatmul.f32.gmra.mxu0 %v447
        %v469 = vpop.f32.mrf.mxu0
        %v470 = vadd.f32 0.0, %v469
        %471 = vdwg.mxu0
        %v472 = vmul.f32 %v392, 0.25
        %v473 = vmul.f32 %v418, 0.25
        %v474 = vmul.f32 %v444, 0.25
        %v475 = vmul.f32 %v470, 0.25
        %v476 = vld [vmem:[%s353] sm:$0x1]
        %vm477 = vcmp.ne.s32.totalorder %v476, 0
        %v478 = vsel %vm477, 1, 0
        %v479 = vperm.slane %v478, 0
        %vm480 = vcmp.eq.s32.totalorder %v479, 1
        %v481 = vsel %vm480, -1e+09, %v472
        %v482 = vsel %vm480, -1e+09, %v473
        %v483 = vsel %vm480, -1e+09, %v474
        %v484 = vsel %vm480, -1e+09, %v475
        %vm485 = vcmask 64512
        %v486 = vsel %vm485, %v481, -inf
        %487 = vmax.xlane.f32.xlu0 %v486
        %v488 = vpop.xlane.xlu0 %487
        %v489 = vsel %vm485, %v482, -inf
        %490 = vmax.xlane.f32.xlu0 %v489
        %v491 = vpop.xlane.xlu0 %490
        %v492 = vsel %vm485, %v483, -inf
        %493 = vmax.xlane.f32.xlu0 %v492
        %v494 = vpop.xlane.xlu0 %493
        %v495 = vsel %vm485, %v484, -inf
        %496 = vmax.xlane.f32.xlu0 %v495
        %v497 = vpop.xlane.xlu0 %496
        %v498 = vsub.f32 %v481, %v488
        %v499 = vsub.f32 %v482, %v491
        %v500 = vsub.f32 %v483, %v494
        %v501 = vsub.f32 %v484, %v497
        %v502 = vmul.f32 %v498, 1.442695
        %v503 = vpow.pop %v502
        %v504 = vmul.f32 %v499, 1.442695
        %v505 = vpow.pop %v504
        %v506 = vmul.f32 %v500, 1.442695
        %v507 = vpow.pop %v506
        %v508 = vmul.f32 %v501, 1.442695
        %v509 = vpow.pop %v508
        %v510 = vsel %vm485, %v503, 0.0
        %511 = vadd.xlane.f32.xlu0 %v510
        %v512 = vpop.xlane.xlu0 %511
        %v513 = vsel %vm485, %v505, 0.0
        %514 = vadd.xlane.f32.xlu0 %v513
        %v515 = vpop.xlane.xlu0 %514
        %v516 = vsel %vm485, %v507, 0.0
        %517 = vadd.xlane.f32.xlu0 %v516
        %v518 = vpop.xlane.xlu0 %517
        %v519 = vsel %vm485, %v509, 0.0
        %520 = vadd.xlane.f32.xlu0 %v519
        %v521 = vpop.xlane.xlu0 %520
        %v522 = vrcp.pop %v512
        %v523 = vrcp.pop %v515
        %v524 = vrcp.pop %v518
        %v525 = vrcp.pop %v521
        %v526 = vmul.f32 %v503, %v522
        %v527 = vmul.f32 %v505, %v523
        %v528 = vmul.f32 %v507, %v524
        %v529 = vmul.f32 %v509, %v525
        %v531 = vsel %vm485, %v526, 0
        %533 = vmatpush.msra.mxu0 0.0
        %534 = vmatpush.msra.mxu0 0.0
        %535 = vmatpush.msra.mxu0 0.0
        %536 = vmatpush.msra.mxu0 0.0
        %537 = vmatpush.msra.mxu0 0.0
        %538 = vmatpush.msra.mxu0 0.0
        %539 = vmatpush.msra.mxu0 0.0
        %540 = vmatpush.msra.mxu0 0.0
        %541 = vmatpush.msra.mxu0 0.0
        %542 = vmatpush.msra.mxu0 0.0
        %543 = vmatpush.msra.mxu0 0.0
        %544 = vmatpush.msra.mxu0 0.0
        %545 = vmatpush.msra.mxu0 0.0
        %546 = vmatpush.msra.mxu0 0.0
        %547 = vmatpush.msra.mxu0 0.0
        %548 = vmatpush.msra.mxu0 %v363
        %549 = vmatmul.f32.gmra.mxu0 %v531
        %v550 = vpop.f32.mrf.mxu0
        %v551 = vadd.f32 0.0, %v550
        %552 = vdwg.mxu0
        %v554 = vsel %vm485, %v527, 0
        %556 = vmatpush.msra.mxu0 0.0
        %557 = vmatpush.msra.mxu0 0.0
        %558 = vmatpush.msra.mxu0 0.0
        %559 = vmatpush.msra.mxu0 0.0
        %560 = vmatpush.msra.mxu0 0.0
        %561 = vmatpush.msra.mxu0 0.0
        %562 = vmatpush.msra.mxu0 0.0
        %563 = vmatpush.msra.mxu0 0.0
        %564 = vmatpush.msra.mxu0 0.0
        %565 = vmatpush.msra.mxu0 0.0
        %566 = vmatpush.msra.mxu0 0.0
        %567 = vmatpush.msra.mxu0 0.0
        %568 = vmatpush.msra.mxu0 0.0
        %569 = vmatpush.msra.mxu0 0.0
        %570 = vmatpush.msra.mxu0 0.0
        %571 = vmatpush.msra.mxu0 %v364
        %572 = vmatmul.f32.gmra.mxu0 %v554
        %v573 = vpop.f32.mrf.mxu0
        %v574 = vadd.f32 0.0, %v573
        %575 = vdwg.mxu0
        %v577 = vsel %vm485, %v528, 0
        %579 = vmatpush.msra.mxu0 0.0
        %580 = vmatpush.msra.mxu0 0.0
        %581 = vmatpush.msra.mxu0 0.0
        %582 = vmatpush.msra.mxu0 0.0
        %583 = vmatpush.msra.mxu0 0.0
        %584 = vmatpush.msra.mxu0 0.0
        %585 = vmatpush.msra.mxu0 0.0
        %586 = vmatpush.msra.mxu0 0.0
        %587 = vmatpush.msra.mxu0 0.0
        %588 = vmatpush.msra.mxu0 0.0
        %589 = vmatpush.msra.mxu0 0.0
        %590 = vmatpush.msra.mxu0 0.0
        %591 = vmatpush.msra.mxu0 0.0
        %592 = vmatpush.msra.mxu0 0.0
        %593 = vmatpush.msra.mxu0 0.0
        %594 = vmatpush.msra.mxu0 %v365
        %595 = vmatmul.f32.gmra.mxu0 %v577
        %v596 = vpop.f32.mrf.mxu0
        %v597 = vadd.f32 0.0, %v596
        %598 = vdwg.mxu0
        %v600 = vsel %vm485, %v529, 0
        %602 = vmatpush.msra.mxu0 0.0
        %603 = vmatpush.msra.mxu0 0.0
        %604 = vmatpush.msra.mxu0 0.0
        %605 = vmatpush.msra.mxu0 0.0
        %606 = vmatpush.msra.mxu0 0.0
        %607 = vmatpush.msra.mxu0 0.0
        %608 = vmatpush.msra.mxu0 0.0
        %609 = vmatpush.msra.mxu0 0.0
        %610 = vmatpush.msra.mxu0 0.0
        %611 = vmatpush.msra.mxu0 0.0
        %612 = vmatpush.msra.mxu0 0.0
        %613 = vmatpush.msra.mxu0 0.0
        %614 = vmatpush.msra.mxu0 0.0
        %615 = vmatpush.msra.mxu0 0.0
        %616 = vmatpush.msra.mxu0 0.0
        %617 = vmatpush.msra.mxu0 %v366
        %618 = vmatmul.f32.gmra.mxu0 %v600
        %v619 = vpop.f32.mrf.mxu0
        %v620 = vadd.f32 0.0, %v619
        %621 = vdwg.mxu0
        %622 = vst.msk [vmem:[%s347] sm:$0xff] %vm367, %v551
        %623 = vst.msk [vmem:[%s347 + $0x8] sm:$0xff] %vm367, %v574
        %624 = vst.msk [vmem:[%s347 + $0x10] sm:$0xff] %vm367, %v597
        %625 = vst.msk [vmem:[%s347 + $0x18] sm:$0xff] %vm367, %v620
        %s626 = sand.u32 %s167, 1
        %s627 = scalar_lea.sflag [#allocation4], %s626
        %s628 = sand.u32 %s167, 1
        %s629 = smul.addr %s628, 32
        %s630 = scalar_lea.vmem [#allocation8], %s629
        // Predicated region
        $region49: #{tpu_custom_call.1} parent=35 // pred_check
          %p631 = pneg %p177
        $region50: #{tpu_custom_call.1} parent=35 // pred_check_branch
          %633 = sbr.rel (%p631) target = $region52
        $region51: #{tpu_custom_call.1} parent=35 // pred_region
          %s634 = smul.u32 4, %s30
          %636 = vsyncadd %s627, 0
          %s637 = sadd.s32 %s31, %s634
          %s638 = smul.addr %s29, 4
          %s639 = sadd.s32 %s637, %s638
          %s640 = smul.addr %s639, 8
          %s641 = scalar_lea.hbm %s4, %s640
          %s642 = sshll.u32 %s630, 4
          %s643 = int_to_ptr.vmem [resolvable:$true] %s642
          %s644 = sshll.u32 %s641, 4
          %s645 = int_to_ptr.hbm [resolvable:$true] %s644
          %650 = dma.vmem_to_hbm [thread:$0]  %s643, 512, %s645, %s627, 128, 128, 8
        $region52: #{tpu_custom_call.1} parent=35 // pred_fallthru
          _
      $region36: #{tpu_custom_call.1} parent=5 // pred_fallthru
        _
      %p651 = scmp.le.s32.totalorder 2, %s19
      // Predicated region
      $region53: #{tpu_custom_call.1} parent=5 // pred_check
        %p652 = pneg %p651
      $region54: #{tpu_custom_call.1} parent=5 // pred_check_branch
        %654 = sbr.rel (%p652) target = $region56
      $region55: #{tpu_custom_call.1} parent=5 // pred_region
        %s655 = ssub.s32 %s19, 2
        // Predicated region
        $region57: #{tpu_custom_call.1} parent=55 // pred_check
          %p656 = pneg %p183
        $region58: #{tpu_custom_call.1} parent=55 // pred_check_branch
          %658 = sbr.rel (%p656) target = $region60
        $region59: #{tpu_custom_call.1} parent=55 // pred_region
          %s659 = sand.u32 %s168, 1
          %s660 = scalar_lea.sflag [#allocation4], %s659
          %s661 = sand.u32 %s168, 1
          %s662 = smul.addr %s661, 32
          %s663 = scalar_lea.vmem [#allocation8], %s662
          %665 = dma.done %s660, 512
        $region60: #{tpu_custom_call.1} parent=55 // pred_fallthru
          _
      $region56: #{tpu_custom_call.1} parent=5 // pred_fallthru
        _
    $region6: #{tpu_custom_call.1} parent=1 // loop_footer
      %s23 = sadd.s32 1, %s19
    $region7: #{tpu_custom_call.1} parent=1 // loop_footer_branch
      %18 = sbr.rel target = $region3
    $region8: #{tpu_custom_call.1} parent=1 // loop_exit
      _
    %666 = vsyncpa [#allocation3], 1
    %s667 = scalar_lea.sflag [#allocation3], 1
    %668 = vsyncpa %s667, 1
    %669 = vsyncpa [#allocation6], 1
    %s670 = scalar_lea.sflag [#allocation6], 1
    %671 = vsyncpa %s670, 1
    %672 = vsyncpa [#allocation4], 1
    %s673 = scalar_lea.sflag [#allocation4], 1
    %674 = vsyncpa %s673, 1

</llo_original>
